<compile_context>
chip_gen: v7x
topology: tpu7x:2x2x1
jax: 0.10.0
libtpu: 0.0.40
codegen_flags: <defaults>
</compile_context>

<pallas_src>
import functools

import jax
import jax.numpy as jnp
from jax.experimental import pallas as pl
from jax.experimental.pallas import tpu as pltpu

LANES = 128
BLOCK_BYTES = 4 << 20          # ~4 MiB per input per block (byte-budgeted tiles)


def _round_up(x, m):
    return ((x + m - 1) // m) * m


def _tensorcores_per_device():
    """2 only on v7x-style multi-TensorCore devices; 1 elsewhere (v5e/v6e/...)."""
    try:
        kind = jax.devices()[0].device_kind.lower()
    except Exception:
        return 1
    return 2 if "v7" in kind else 1


def _dice_kernel(x_ref, t_ref, out_ref, *, logits, tile_rows, num_tiles,
                 tiles_per_core, has_core_axis, has_slack, need_mask,
                 mask_full_rows, mask_rem):
    if has_core_axis:
        c = pl.program_id(0)            # core / row-range slice (CORE_PARALLEL)
        j = pl.program_id(1)            # tile within the slice (reduction axis)
        g = c * tiles_per_core + j      # global tile index
    else:
        j = pl.program_id(0)
        g = j

    # The output block index is constant across the reduction axis j, so the
    # block stays VMEM-resident: accumulate into it directly (no scratch).
    @pl.when(j == 0)
    def _():
        out_ref[...] = jnp.zeros_like(out_ref)

    def load():
        x = x_ref[...].astype(jnp.float32)
        t = t_ref[...].astype(jnp.float32)
        if logits:
            # sigmoid(x) == 0.5 * tanh(0.5 * x) + 0.5  (single EUP op)
            x = 0.5 * jnp.tanh(0.5 * x) + 0.5
        return x, t

    def accumulate(x, t):
        # Reduce the (tile_rows, 128) block to per-vreg (8, 128) partials with
        # pure VPU adds; the single cross-lane reduce happens in the wrapper.
        out_ref[0] += jnp.sum((x * t).reshape(-1, 8, LANES), axis=0)
        out_ref[1] += jnp.sum((x + t).reshape(-1, 8, LANES), axis=0)

    if need_mask:
        last = num_tiles - 1

        @pl.when(g < last)
        def _():
            x, t = load()
            accumulate(x, t)

        @pl.when(g == last)
        def _():
            # Tail mask from tile-local indices (int32-safe for any n):
            # rows below mask_full_rows are fully valid; row == mask_full_rows
            # has its first mask_rem lanes valid; everything else (lane pad /
            # partial-block OOB garbage) is zeroed before accumulation.
            x, t = load()
            row = jax.lax.broadcasted_iota(jnp.int32, (tile_rows, LANES), 0)
            m = row < mask_full_rows
            if mask_rem:
                lane = jax.lax.broadcasted_iota(jnp.int32, (tile_rows, LANES), 1)
                m = jnp.logical_or(
                    m, jnp.logical_and(row == mask_full_rows, lane < mask_rem))
            accumulate(jnp.where(m, x, 0.0), jnp.where(m, t, 0.0))
    elif has_slack:
        @pl.when(g < num_tiles)
        def _():
            x, t = load()
            accumulate(x, t)
    else:
        x, t = load()
        accumulate(x, t)


def dice_loss(inputs, targets, smooth=1.0, logits=False):
    """Pallas TPU implementation of DiceLoss.forward (returns scalar f32)."""
    assert inputs.shape == targets.shape
    x = inputs.reshape(-1)
    t = targets.reshape(-1)
    n = int(x.shape[0])

    # Sublane packing: 8 rows/vreg for 4-byte dtypes, 16 for 2-byte, 32 for 1.
    isx = x.dtype.itemsize
    ist = t.dtype.itemsize
    sub = {4: 8, 2: 16, 1: 32}.get(min(isx, ist), 8)

    # Pad the tail so rows is a multiple of the sublane pack (no-op for the
    # common aligned sizes); padded values are masked in-kernel.
    pad = (-n) % (LANES * sub)
    if pad:
        x = jnp.pad(x, (0, pad))
        t = jnp.pad(t, (0, pad))
    rows = (n + pad) // LANES
    x2 = x.reshape(rows, LANES)
    t2 = t.reshape(rows, LANES)

    # Byte-budgeted block: ~4 MiB per input (always a multiple of `sub`).
    budget_rows = max(sub, BLOCK_BYTES // (LANES * max(isx, ist)))
    tile_rows = min(budget_rows, rows)

    num_tiles = pl.cdiv(rows, tile_rows)
    ncores = min(_tensorcores_per_device(), num_tiles)
    tiles_per_core = pl.cdiv(num_tiles, ncores)
    has_slack = ncores * tiles_per_core > num_tiles
    need_mask = (rows * LANES != n) or (rows % tile_rows != 0)

    # Static tail-mask parameters for the last tile.
    mask_full_rows = (n // LANES) - (num_tiles - 1) * tile_rows
    mask_rem = n % LANES

    kernel = functools.partial(
        _dice_kernel, logits=bool(logits), tile_rows=tile_rows,
        num_tiles=num_tiles, tiles_per_core=tiles_per_core,
        has_core_axis=(ncores > 1), has_slack=bool(has_slack),
        need_mask=bool(need_mask), mask_full_rows=int(mask_full_rows),
        mask_rem=int(mask_rem))

    if ncores == 1:
        grid = (num_tiles,)
        in_map = lambda j: (j, 0)
        out_map = lambda j: (0, 0, 0, 0)
        semantics = ("arbitrary",)
    else:
        grid = (ncores, tiles_per_core)
        last = num_tiles - 1
        if has_slack:
            # Clamp so the slack step on the short slice stays in bounds; its
            # contribution is skipped in the kernel.
            in_map = lambda c, j: (jnp.minimum(c * tiles_per_core + j, last), 0)
        else:
            in_map = lambda c, j: (c * tiles_per_core + j, 0)
        out_map = lambda c, j: (c, 0, 0, 0)
        semantics = (getattr(pltpu, "CORE_PARALLEL", "parallel"), "arbitrary")

    # Explicit VMEM limit: 2 pipeline buffers x (both input blocks) + headroom,
    # so 4 MiB blocks also work under v5e's 16 MiB default scoped-VMEM limit.
    in_block_bytes = tile_rows * LANES * (isx + ist)
    vmem_limit = min(2 * in_block_bytes + (24 << 20), 56 << 20)

    cost = pl.CostEstimate(
        flops=int(5 * n),
        transcendentals=int(n if logits else 0),
        bytes_accessed=int(n * (isx + ist) + ncores * 2 * 8 * LANES * 4),
    )

    partials = pl.pallas_call(
        kernel,
        out_shape=jax.ShapeDtypeStruct((ncores, 2, 8, LANES), jnp.float32),
        grid_spec=pltpu.PrefetchScalarGridSpec(
            num_scalar_prefetch=0,
            grid=grid,
            in_specs=[
                pl.BlockSpec((tile_rows, LANES), in_map),
                pl.BlockSpec((tile_rows, LANES), in_map),
            ],
            # Leading dim squeezed: kernel sees a (2, 8, 128) resident block.
            out_specs=pl.BlockSpec((None, 2, 8, LANES), out_map),
        ),
        compiler_params=pltpu.CompilerParams(
            dimension_semantics=semantics,
            vmem_limit_bytes=int(vmem_limit),
        ),
        cost_estimate=cost,
    )(x2, t2)

    intersection = jnp.sum(partials[:, 0])
    union = jnp.sum(partials[:, 1])
    smooth = jnp.float32(smooth)
    dice = (2.0 * intersection + smooth) / (union + smooth)
    return (1.0 - dice).astype(jnp.float32)


def dice_loss_ref(inputs, targets, smooth=1.0, logits=False):
    x = inputs.astype(jnp.float32)
    t = targets.astype(jnp.float32)
    if logits:
        x = jax.nn.sigmoid(x)
    intersection = jnp.sum(x * t)
    union = jnp.sum(x) + jnp.sum(t)
    dice = (2.0 * intersection + smooth) / (union + smooth)
    return 1.0 - dice


if __name__ == "__main__":
    key = jax.random.PRNGKey(0)
    k1, k2, k3 = jax.random.split(key, 3)

    def check(inputs, targets, smooth, logits, tol=1e-5):
        out = jax.block_until_ready(
            dice_loss(inputs, targets, smooth=smooth, logits=logits))
        ref = dice_loss_ref(inputs, targets, smooth=smooth, logits=logits)
        assert jnp.allclose(out, ref, atol=tol, rtol=tol), (out, ref)

    # NCHW-shaped synthetic inputs (batch=2, channels=4, spatial=16x16).
    shape = (2, 4, 16, 16)
    probs = jax.random.uniform(k1, shape, dtype=jnp.float32)
    targets = (jax.random.uniform(k2, shape, dtype=jnp.float32) > 0.5).astype(jnp.float32)

    # logits=False path (DiceLoss default)
    check(probs, targets, 1.0, False)

    # logits=True path
    logit_in = jax.random.normal(k1, shape, dtype=jnp.float32)
    check(logit_in, targets, 1.0, True)

    # native bf16 inputs (no wrapper upcast; 16-row sublane packing)
    check(probs.astype(jnp.bfloat16), targets.astype(jnp.bfloat16), 1.0, False)

    # ragged size (n % 128 != 0) -> exercises in-kernel tail masking
    shape2 = (2, 4, 10, 25)
    probs2 = jax.random.uniform(k1, shape2, dtype=jnp.float32)
    targets2 = (jax.random.uniform(k2, shape2) > 0.5).astype(jnp.float32)
    check(probs2, targets2, 1.0, False)
    check(jax.random.normal(k3, shape2, dtype=jnp.float32), targets2, 1.0, True)

    # larger aligned case: single byte-budgeted block, no masking
    shape3 = (2, 8, 128, 130)
    probs3 = jax.random.uniform(k1, shape3, dtype=jnp.float32)
    targets3 = (jax.random.uniform(k3, shape3) > 0.5).astype(jnp.float32)
    check(probs3, targets3, 1.0, False)

    # multi-tile ragged case: multiple 4 MiB blocks, partial last block,
    # lane-pad + partial-row tail mask; both plain and logits paths.
    shape4 = (1, 3, 641, 643)
    probs4 = jax.random.uniform(k1, shape4, dtype=jnp.float32)
    targets4 = (jax.random.uniform(k2, shape4) > 0.5).astype(jnp.float32)
    check(probs4, targets4, 1.0, False, tol=5e-5)
    check(jax.random.normal(k3, shape4, dtype=jnp.float32), targets4, 1.0, True,
          tol=5e-5)

    print("KERNEL_OK")
</pallas_src>

<mosaic_0001>
module attributes {stable_mosaic.version = 11 : i64} {
  func.func @_dice_kernel(%arg0: i32, %arg1: memref<16x128xf32, #tpu.memory_space<vmem>>, %arg2: memref<16x128xf32, #tpu.memory_space<vmem>>, %arg3: memref<1x2x8x128xf32, #tpu.memory_space<vmem>>) attributes {dimension_semantics = [#tpu.dimension_semantics<arbitrary>], iteration_bounds = array<i64: 1>, scalar_prefetch = 0 : i64, scratch_operands = 0 : i64, tpu.core_type = #tpu.core_type<tc>, window_params = [{transform_indices = @transform_0, window_bounds = array<i64: 16, 128>}, {transform_indices = @transform_1, window_bounds = array<i64: 16, 128>}, {pipeline_mode = #tpu.pipeline_mode<synchronous>, transform_indices = @transform_2, window_bounds = array<i64: 1, 2, 8, 128>}]} {
    %c0_i32 = arith.constant 0 : i32
    %0 = arith.cmpi eq, %arg0, %c0_i32 : i32
    %1 = arith.extui %0 : i1 to i32
    %c0_i32_0 = arith.constant 0 : i32
    %2 = arith.cmpi ne, %1, %c0_i32_0 : i32
    scf.if %2 {
      %cst_20 = arith.constant 0.000000e+00 : f32
      %23 = vector.broadcast %cst_20 : f32 to vector<2x8x128xf32>
      %c0_21 = arith.constant 0 : index
      %c0_22 = arith.constant 0 : index
      %c0_23 = arith.constant 0 : index
      %c0_24 = arith.constant 0 : index
      %24 = vector.load %arg3[%c0_21, %c0_22, %c0_23, %c0_24] : memref<1x2x8x128xf32, #tpu.memory_space<vmem>>, vector<1x2x8x128xf32>
      %25 = vector.shape_cast %24 : vector<1x2x8x128xf32> to vector<2x8x128xf32>
      %26 = vector.shape_cast %23 : vector<2x8x128xf32> to vector<1x2x8x128xf32>
      tpu.vector_store %arg3[%c0_21, %c0_22, %c0_23, %c0_24], %26 {strides = array<i32>} : memref<1x2x8x128xf32, #tpu.memory_space<vmem>>, vector<1x2x8x128xf32>,
    } else {
    }
    %c0 = arith.constant 0 : index
    %c0_1 = arith.constant 0 : index
    %3 = vector.load %arg1[%c0, %c0_1] : memref<16x128xf32, #tpu.memory_space<vmem>>, vector<16x128xf32>
    %c0_2 = arith.constant 0 : index
    %c0_3 = arith.constant 0 : index
    %4 = vector.load %arg2[%c0_2, %c0_3] : memref<16x128xf32, #tpu.memory_space<vmem>>, vector<16x128xf32>
    %c0_4 = arith.constant 0 : index
    %c0_5 = arith.constant 0 : index
    %c0_6 = arith.constant 0 : index
    %c0_7 = arith.constant 0 : index
    %5 = vector.load %arg3[%c0_4, %c0_5, %c0_6, %c0_7] : memref<1x2x8x128xf32, #tpu.memory_space<vmem>>, vector<1x1x8x128xf32>
    %6 = vector.shape_cast %5 : vector<1x1x8x128xf32> to vector<8x128xf32>
    %7 = arith.mulf %3, %4 : vector<16x128xf32>
    %8 = vector.shape_cast %7 : vector<16x128xf32> to vector<2x8x128xf32>
    %cst = arith.constant dense<0.000000e+00> : vector<8x128xf32>
    %9 = vector.multi_reduction <add>, %8, %cst [0] : vector<2x8x128xf32> to vector<8x128xf32>
    %10 = arith.addf %6, %9 : vector<8x128xf32>
    %c0_8 = arith.constant 0 : index
    %c0_9 = arith.constant 0 : index
    %c0_10 = arith.constant 0 : index
    %c0_11 = arith.constant 0 : index
    %11 = vector.load %arg3[%c0_8, %c0_9, %c0_10, %c0_11] : memref<1x2x8x128xf32, #tpu.memory_space<vmem>>, vector<1x1x8x128xf32>
    %12 = vector.shape_cast %11 : vector<1x1x8x128xf32> to vector<8x128xf32>
    %13 = vector.shape_cast %10 : vector<8x128xf32> to vector<1x1x8x128xf32>
    tpu.vector_store %arg3[%c0_8, %c0_9, %c0_10, %c0_11], %13 {strides = array<i32>} : memref<1x2x8x128xf32, #tpu.memory_space<vmem>>, vector<1x1x8x128xf32>,
    %c0_12 = arith.constant 0 : index
    %c1 = arith.constant 1 : index
    %c0_13 = arith.constant 0 : index
    %c0_14 = arith.constant 0 : index
    %14 = vector.load %arg3[%c0_12, %c1, %c0_13, %c0_14] : memref<1x2x8x128xf32, #tpu.memory_space<vmem>>, vector<1x1x8x128xf32>
    %15 = vector.shape_cast %14 : vector<1x1x8x128xf32> to vector<8x128xf32>
    %16 = arith.addf %3, %4 : vector<16x128xf32>
    %17 = vector.shape_cast %16 : vector<16x128xf32> to vector<2x8x128xf32>
    %cst_15 = arith.constant dense<0.000000e+00> : vector<8x128xf32>
    %18 = vector.multi_reduction <add>, %17, %cst_15 [0] : vector<2x8x128xf32> to vector<8x128xf32>
    %19 = arith.addf %15, %18 : vector<8x128xf32>
    %c0_16 = arith.constant 0 : index
    %c1_17 = arith.constant 1 : index
    %c0_18 = arith.constant 0 : index
    %c0_19 = arith.constant 0 : index
    %20 = vector.load %arg3[%c0_16, %c1_17, %c0_18, %c0_19] : memref<1x2x8x128xf32, #tpu.memory_space<vmem>>, vector<1x1x8x128xf32>
    %21 = vector.shape_cast %20 : vector<1x1x8x128xf32> to vector<8x128xf32>
    %22 = vector.shape_cast %19 : vector<8x128xf32> to vector<1x1x8x128xf32>
    tpu.vector_store %arg3[%c0_16, %c1_17, %c0_18, %c0_19], %22 {strides = array<i32>} : memref<1x2x8x128xf32, #tpu.memory_space<vmem>>, vector<1x1x8x128xf32>,
    return
  }
  func.func @transform_0(%arg0: i32) -> (i32, i32) {
    %c0_i32 = arith.constant 0 : i32
    %c0_i32_0 = arith.constant 0 : i32
    return %arg0, %c0_i32 : i32, i32
  }
  func.func @transform_1(%arg0: i32) -> (i32, i32) {
    %c0_i32 = arith.constant 0 : i32
    %c0_i32_0 = arith.constant 0 : i32
    return %arg0, %c0_i32 : i32, i32
  }
  func.func @transform_2(%arg0: i32) -> (i32, i32, i32, i32) {
    %c0_i32 = arith.constant 0 : i32
    %c0_i32_0 = arith.constant 0 : i32
    %c0_i32_1 = arith.constant 0 : i32
    %c0_i32_2 = arith.constant 0 : i32
    %c0_i32_3 = arith.constant 0 : i32
    return %c0_i32, %c0_i32_0, %c0_i32_1, %c0_i32_2 : i32, i32, i32, i32
  }
}

</mosaic_0001>

<llo_original>
// kernel: tpu_custom_call.1
$region0: #{tpu_custom_call.1}
  #allocation0 [shape = 'u32[]', space=smem, size = 0x4, offset = 0x4, fixed_abs, tag = 'smem constant byte address 0x4 - core index']
  #allocation1 [shape = 'u32[144,128]{1,0:T(1,128)}', space=vmem, size = 0x12000, scoped, tag = 'internal scratch']
  %s0 = inlined_call_operand.hbm [shape: f32[16,128], index: 0, kind: input, shape index: {}]
  %s1 = inlined_call_operand.hbm [shape: f32[16,128], index: 1, kind: input, shape index: {}]
  %s2 = inlined_call_operand.hbm [shape: f32[1,2,8,128], index: 2, kind: output, shape index: {}]
  %s3 = sld [smem:[#allocation0]]
  $region30: #{tpu_custom_call.1} parent=0
    _
  %s5 = ssub.s32 1, %s3
  %s6 = scalar_select 0, %s5, %s3
  $region1: #{tpu_custom_call.1} parent=0
    #allocation2 [shape = 'u8[8192]{0}', space=vmem, size = 0x2000, scoped, tag = 'input window, operand 0, single buffered']
    #allocation3 [shape = 's32[1]{0}', space=sflag, size = 0x4, scoped, tag = 'scoped memory for tpu_custom_call.1']
    #allocation4 [shape = 's32[1]{0}', space=sflag, size = 0x4, scoped, tag = 'scoped memory for tpu_custom_call.1']
    #allocation5 [shape = 'u8[8192]{0}', space=vmem, size = 0x2000, scoped, tag = 'input window, operand 1, single buffered']
    #allocation6 [shape = 's32[1]{0}', space=sflag, size = 0x4, scoped, tag = 'scoped memory for tpu_custom_call.1']
    #allocation7 [shape = 'u8[8192]{0}', space=vmem, size = 0x2000, scoped, tag = 'output window, operand 0, single buffered']
    %7 = vsyncpa [#allocation3], 0
    %8 = vsyncpa [#allocation6], 0
    %9 = vsyncpa [#allocation4], 0
    // Predicated region
    $region2: #{tpu_custom_call.1} parent=1 // pred_check
      _
    $region3: #{tpu_custom_call.1} parent=1 // pred_check_branch
      %11 = sbr.rel (0) target = $region5
    $region4: #{tpu_custom_call.1} parent=1 // pred_region
      %s13 = ssub.s32 256, 256
      %14 = vsyncadd [#allocation3], %s13
      %s15 = sshll.u32 [#allocation2], 4
      %s16 = int_to_ptr.vmem [resolvable:$true] %s15
      %21 = dma.hbm_to_vmem [thread:$0]  %s0, 256, %s16, [#allocation3], 128, 128, 8
    $region5: #{tpu_custom_call.1} parent=1 // pred_fallthru
      _
    // Predicated region
    $region6: #{tpu_custom_call.1} parent=1 // pred_check
      _
    $region7: #{tpu_custom_call.1} parent=1 // pred_check_branch
      %23 = sbr.rel (0) target = $region9
    $region8: #{tpu_custom_call.1} parent=1 // pred_region
      %s25 = ssub.s32 256, 256
      %26 = vsyncadd [#allocation6], %s25
      %s27 = sshll.u32 [#allocation5], 4
      %s28 = int_to_ptr.vmem [resolvable:$true] %s27
      %33 = dma.hbm_to_vmem [thread:$0]  %s1, 256, %s28, [#allocation6], 128, 128, 8
    $region9: #{tpu_custom_call.1} parent=1 // pred_fallthru
      _
    // Predicated region
    $region10: #{tpu_custom_call.1} parent=1 // pred_check
      _
    $region11: #{tpu_custom_call.1} parent=1 // pred_check_branch
      %35 = sbr.rel (0) target = $region13
    $region12: #{tpu_custom_call.1} parent=1 // pred_region
      %36 = dma.done [#allocation3], 256
    $region13: #{tpu_custom_call.1} parent=1 // pred_fallthru
      _
    // Predicated region
    $region14: #{tpu_custom_call.1} parent=1 // pred_check
      _
    $region15: #{tpu_custom_call.1} parent=1 // pred_check_branch
      %38 = sbr.rel (0) target = $region17
    $region16: #{tpu_custom_call.1} parent=1 // pred_region
      %39 = dma.done [#allocation6], 256
    $region17: #{tpu_custom_call.1} parent=1 // pred_fallthru
      _
    %p40 = scmp.eq.s32.totalorder 0, 0
    // Predicated region
    $region18: #{tpu_custom_call.1} parent=1 // pred_check
      %p41 = pneg %p40
    $region19: #{tpu_custom_call.1} parent=1 // pred_check_branch
      %43 = sbr.rel (%p41) target = $region21
    $region20: #{tpu_custom_call.1} parent=1 // pred_region
      %44 = vst [vmem:[#allocation7] sm:$0xff] 0.0
      %45 = vst [vmem:[#allocation7 + $0x8] sm:$0xff] 0.0
    $region21: #{tpu_custom_call.1} parent=1 // pred_fallthru
      _
    %v46 = vld [vmem:[#allocation2] sm:$0xff]
    %v47 = vld [vmem:[#allocation2 + $0x8] sm:$0xff]
    %v48 = vld [vmem:[#allocation5] sm:$0xff]
    %v49 = vld [vmem:[#allocation5 + $0x8] sm:$0xff]
    %v50 = vld [vmem:[#allocation7] sm:$0xff]
    %v51 = vmul.f32 %v46, %v48
    %v52 = vmul.f32 %v47, %v49
    %v53 = vadd.f32 %v51, %v52
    %v54 = vadd.f32 %v50, %v53
    %55 = vst [vmem:[#allocation7] sm:$0xff] %v54
    %s56 = scalar_lea.vmem [#allocation7], 8
    %v57 = vld [vmem:[%s56] sm:$0xff]
    %v58 = vadd.f32 %v46, %v48
    %v59 = vadd.f32 %v47, %v49
    %v60 = vadd.f32 %v58, %v59
    %v61 = vadd.f32 %v57, %v60
    %62 = vst [vmem:[%s56] sm:$0xff] %v61
    // Predicated region
    $region22: #{tpu_custom_call.1} parent=1 // pred_check
      _
    $region23: #{tpu_custom_call.1} parent=1 // pred_check_branch
      %64 = sbr.rel (0) target = $region25
    $region24: #{tpu_custom_call.1} parent=1 // pred_region
      %s66 = ssub.s32 256, 256
      %67 = vsyncadd [#allocation4], %s66
      %s68 = sshll.u32 [#allocation7], 4
      %s69 = int_to_ptr.vmem [resolvable:$true] %s68
      %74 = dma.vmem_to_hbm [thread:$0]  %s69, 256, %s2, [#allocation4], 128, 128, 8
    $region25: #{tpu_custom_call.1} parent=1 // pred_fallthru
      _
    // Predicated region
    $region26: #{tpu_custom_call.1} parent=1 // pred_check
      _
    $region27: #{tpu_custom_call.1} parent=1 // pred_check_branch
      %76 = sbr.rel (0) target = $region29
    $region28: #{tpu_custom_call.1} parent=1 // pred_region
      %77 = dma.done [#allocation4], 256
    $region29: #{tpu_custom_call.1} parent=1 // pred_fallthru
      _
    %78 = vsyncpa [#allocation3], 1
    %79 = vsyncpa [#allocation6], 1
    %80 = vsyncpa [#allocation4], 1

</llo_original>
